<compile_context>
chip_gen: v7x
topology: tpu7x:2x2x1
jax: 0.10.0
libtpu: 0.0.40
codegen_flags: <defaults>
</compile_context>

<pallas_src>
import functools

import jax
import jax.numpy as jnp
from jax import lax
from jax.experimental import pallas as pl
from jax.experimental.pallas import tpu as pltpu


def fbma_kernel(x_ref, mask_ref, wT_ref, b_ref, pq_ref, out_ref, *,
                bf16_vector_math):
    Bt, A, L = out_ref.shape            # sequences per step, aspects, seq length

    # ---- MXU phase: rows = Bt*L flattened sequence positions ----------------
    # x arrives f32 (no wrapper-side convert pass over HBM); cast to bf16 on the
    # VPU right before the dot — free under MXU slack.
    x = x_ref[...].astype(jnp.bfloat16)
    acc = jnp.dot(x, wT_ref[...], preferred_element_type=jnp.float32) + b_ref[...]
    if bf16_vector_math:
        # v6e/v7x: bf16 EUP tanh (2x EUP throughput, half the ws VMEM) and the
        # result is already in the MXU operand dtype for the second matmul.
        ws = jnp.tanh(acc.astype(jnp.bfloat16))
    else:
        # v5e: no bf16 VPU/EUP — tanh in f32, cast afterwards.
        ws = jnp.tanh(acc).astype(jnp.bfloat16)
    # P^T x with the batch-invariant (Q^T u_w) scale already folded into P.
    ptx = jnp.dot(ws, pq_ref[...], preferred_element_type=jnp.float32)  # (Bt*L, A)

    # ---- Relayout to lane-dense (Bt, A, L): aspects on sublanes, seq on lanes.
    # (Minor-dim transpose goes through the XLU; the epilogue is hidden under the
    # MXU phase at production D.)
    logits = jnp.tanh(jnp.transpose(ptx.reshape(Bt, L, A), (0, 2, 1)))

    # ---- L2 normalize over the aspect dim (torch dim=1).  rsqrt -> EUP.
    # No epsilon: matches torch.norm(...).div(...) exactly (an exactly-zero
    # aspect vector would NaN in torch too).
    inv_norm = lax.rsqrt(jnp.sum(logits * logits, axis=1, keepdims=True))
    logits = logits * inv_norm

    # ---- Masked softmax over the sequence axis (torch dim=2), lane-dense.
    # |logits| <= 1 after tanh + L2 norm, so exp cannot overflow: the usual
    # max-subtract stabilization is redundant XLU/VPU work and is dropped.
    m = mask_ref[...]                                         # (Bt, 1, L) f32
    e = jnp.exp(logits * m)
    r = e * pl.reciprocal(jnp.sum(e, axis=-1, keepdims=True), approx=True)
    r = r * m
    # Exact final renormalization (rows sum to 1; also cancels the approx error
    # of the softmax denominator above).
    r = r / (jnp.sum(r, axis=-1, keepdims=True) + 1e-13)
    out_ref[...] = r.astype(out_ref.dtype)


def _tpu_generation():
    """Coarse chip-generation tag used only for static tuning knobs."""
    try:
        kind = jax.devices()[0].device_kind.lower()
    except Exception:
        return "v6"
    if "v7" in kind:
        return "v7"
    if "v6" in kind or "trillium" in kind:
        return "v6"
    for old in ("v2", "v3", "v4", "v5"):
        if old in kind:
            return "v5"            # treat <= v5 as "no bf16 VPU/EUP"
    return "v6"


def _round_up(n, m):
    return ((n + m - 1) // m) * m


def _seqs_per_block(B, L, *, target_rows, even_grid):
    """Sequences per grid step.

    Constraints: Bt divides B and the (Bt*L, D) x-block is tileable (rows
    divisible by 8, or the block covers the full B*L axis).  Prefer the largest
    block with rows >= 128 that still leaves >= 2 grid steps (an even step count
    on v7x so the parallel axis splits evenly across its two TensorCores)."""
    legal = [d for d in range(1, B + 1)
             if B % d == 0 and (d == B or (d * L) % 8 == 0)]
    divs = [d for d in legal if d * L <= target_rows]
    if not divs:
        return min(legal)
    good = [d for d in divs
            if d * L >= 128 and (B // d) >= 2
            and (not even_grid or (B // d) % 2 == 0)]
    return max(good) if good else max(divs)


def _vmem_limit_bytes(rows, D, Dp, Bt, A, L, gen, resident_buffers):
    """Explicit scoped-VMEM budget: estimated working set * 1.5 + headroom,
    clamped per generation (v7x has only 64 MiB physical VMEM)."""
    x_blk = rows * D * 4 * 2                         # f32 x, double-buffered
    w_res = D * Dp * 2 * resident_buffers            # bf16 W^T
    p_res = (Dp * A * 2 + Dp * 4) * resident_buffers  # folded P + bias row
    io_blk = (Bt * L * 4 + Bt * A * L * 4) * 2       # mask + out blocks
    ws_tmp = rows * Dp * 4 + rows * Dp * 2           # f32 pre-tanh acc + bf16 ws
    epi = 6 * Bt * A * L * 4                         # logits / softmax temporaries
    working = x_blk + w_res + p_res + io_blk + ws_tmp + epi
    cap = (48 << 20) if gen == "v7" else (100 << 20)
    return int(min(cap, max(32 << 20, int(working * 1.5) + (4 << 20))))


def fbma_forward(inp, mask, u_it_W, u_it_b, P, Q, u_w):
    """inp: (B, L, D) f32, mask: (B, L).  Returns (B, num_aspect, L) like torch."""
    B, L, D = inp.shape
    U, A = Q.shape
    gen = _tpu_generation()

    # ---- batch-invariant host-side glue (parameter-sized, done once) --------
    # Lane-pad the ws feature axis (N of matmul-1 / K of matmul-2) to a multiple
    # of 128.  Exact: tanh(x @ 0 + 0) = 0 and zero P rows contribute nothing.
    # x's own feature (K) axis is deliberately NOT padded — that would cost an
    # extra HBM pass over the activations.
    Dp = _round_up(D, 128)
    pad = Dp - D
    x_flat = inp.reshape(B * L, D)                                    # f32, no convert pass
    mask_f = mask.astype(jnp.float32).reshape(B, 1, L)                # (B, 1, L)
    wT = jnp.pad(u_it_W.T, ((0, 0), (0, pad))).astype(jnp.bfloat16)   # (D, Dp)
    b_row = jnp.pad(u_it_b.reshape(1, D), ((0, 0), (0, pad))).astype(jnp.float32)
    qty = (Q.T @ u_w).reshape(1, A).astype(jnp.float32)               # hoisted Q^T u_w
    pq = jnp.pad(P * qty, ((0, pad), (0, 0))).astype(jnp.bfloat16)    # (Dp, A)

    target_rows = 1024 if gen == "v6" else 512
    Bt = _seqs_per_block(B, L, target_rows=target_rows, even_grid=(gen == "v7"))
    rows = Bt * L
    grid = (B // Bt,)

    kernel = functools.partial(fbma_kernel, bf16_vector_math=(gen != "v5"))

    cost = pl.CostEstimate(
        flops=int(2 * B * L * Dp * (D + A) + 10 * B * A * L),
        transcendentals=int(B * L * (Dp + 2 * A)),
        bytes_accessed=int(B * L * D * 4 + B * L * 4 + D * Dp * 2
                           + Dp * A * 2 + Dp * 4 + B * A * L * 4),
    )

    def build(single_buffer_resident):
        resident_kwargs = (
            dict(pipeline_mode=pl.Buffered(1)) if single_buffer_resident else {}
        )
        n_res_bufs = 1 if single_buffer_resident else 2
        grid_spec = pltpu.PrefetchScalarGridSpec(
            num_scalar_prefetch=0,
            grid=grid,
            in_specs=[
                pl.BlockSpec((rows, D), lambda i: (i, 0)),        # x rows (f32 stream)
                pl.BlockSpec((Bt, 1, L), lambda i: (i, 0, 0)),    # mask, lane-dense
                pl.BlockSpec((D, Dp), lambda i: (0, 0), **resident_kwargs),   # W^T (bf16)
                pl.BlockSpec((1, Dp), lambda i: (0, 0), **resident_kwargs),   # bias row
                pl.BlockSpec((Dp, A), lambda i: (0, 0), **resident_kwargs),   # P*(Q^T u_w)
            ],
            out_specs=pl.BlockSpec((Bt, A, L), lambda i: (i, 0, 0)),
        )
        return pl.pallas_call(
            kernel,
            out_shape=jax.ShapeDtypeStruct((B, A, L), jnp.float32),
            grid_spec=grid_spec,
            compiler_params=pltpu.CompilerParams(
                dimension_semantics=("parallel",),
                vmem_limit_bytes=_vmem_limit_bytes(rows, D, Dp, Bt, A, L, gen,
                                                   n_res_bufs),
            ),
            cost_estimate=cost,
        )

    try:
        out = build(single_buffer_resident=True)(x_flat, mask_f, wT, b_row, pq)
        return jax.block_until_ready(out)   # surface any lowering rejection here
    except Exception:
        # pipeline_mode=pl.Buffered(1) not supported on this jax/libtpu combo —
        # fall back to the default double-buffered pipeline (identical results;
        # only costs extra VMEM for the grid-invariant operands).
        return build(single_buffer_resident=False)(x_flat, mask_f, wT, b_row, pq)


def fbma_reference(inp, mask, W, b, P, Q, uw):
    """Pure-JAX f32 reference mirroring the torch forward exactly."""
    ws = jnp.tanh(jnp.einsum("de,ble->bdl", W, inp) + b[None, :, :])   # (B, D, L)
    ptx = jnp.einsum("da,bdl->bal", P, ws)                             # (B, A, L)
    qty = Q.T @ uw                                                     # (A, 1)
    logits = jnp.tanh(ptx * qty[None, :, :])
    norm = jnp.linalg.norm(logits, axis=1, keepdims=True)
    logits = logits / norm
    m = mask.astype(jnp.float32)[:, None, :]
    r = jax.nn.softmax(logits * m, axis=2)
    r = r * m
    r = r / (r.sum(axis=2, keepdims=True) + 1e-13)
    return r


if __name__ == "__main__":
    # Small shapes consistent with the module:
    B, L = 2, 8
    hidden_dim, num_aspect, u_w_dim = 16, 4, 32
    D = hidden_dim * 2          # bidirectional=True
    U, A = u_w_dim, num_aspect

    key = jax.random.PRNGKey(0)
    ks = jax.random.split(key, 6)
    # deterministic parameter init matching __init__ distributions
    u_it_W = jax.random.uniform(ks[0], (D, D), jnp.float32, -0.1, 0.1)
    u_it_b = jax.random.uniform(ks[1], (D, 1), jnp.float32, -0.1, 0.1)
    P = jax.random.uniform(ks[2], (D, A), jnp.float32, -0.1, 0.1)
    Q = jax.random.uniform(ks[3], (U, A), jnp.float32, -0.1, 0.1)
    xavier_std = (2.0 / (U + 1)) ** 0.5          # xavier_normal for (U, 1)
    u_w = xavier_std * jax.random.normal(ks[4], (U, 1), jnp.float32)

    inp = jax.random.normal(ks[5], (B, L, D), jnp.float32)
    # mask: first sequence fully valid, second has 5 valid positions
    lengths = jnp.array([8, 5])
    mask = (jnp.arange(L)[None, :] < lengths[:, None]).astype(jnp.float32)

    out = fbma_forward(inp, mask, u_it_W, u_it_b, P, Q, u_w)
    out = jax.block_until_ready(out)

    ref = fbma_reference(inp, mask, u_it_W, u_it_b, P, Q, u_w)
    assert out.shape == (B, A, L), out.shape
    # bf16 matmul operands + bf16 tanh (on v6e/v7x) vs. the pure-f32 reference:
    # outputs are probabilities in [0, 1], so an absolute tolerance is appropriate.
    err = float(jnp.max(jnp.abs(out - ref)))
    assert err < 2e-2, err

    print("KERNEL_OK")
</pallas_src>

<mosaic_0001>
module attributes {stable_mosaic.version = 11 : i64} {
  func.func @fbma_kernel(%arg0: i32, %arg1: memref<16x32xf32, #tpu.memory_space<vmem>>, %arg2: memref<2x1x8xf32, #tpu.memory_space<vmem>>, %arg3: memref<32x128xbf16, #tpu.memory_space<vmem>>, %arg4: memref<1x128xf32, #tpu.memory_space<vmem>>, %arg5: memref<128x4xbf16, #tpu.memory_space<vmem>>, %arg6: memref<2x4x8xf32, #tpu.memory_space<vmem>>) attributes {dimension_semantics = [#tpu.dimension_semantics<parallel>], iteration_bounds = array<i64: 1>, scalar_prefetch = 0 : i64, scratch_operands = 0 : i64, tpu.core_type = #tpu.core_type<tc>, window_params = [{transform_indices = @transform_0, window_bounds = array<i64: 16, 32>}, {transform_indices = @transform_1, window_bounds = array<i64: 2, 1, 8>}, {pipeline_mode = #tpu.pipeline_mode<synchronous>, transform_indices = @transform_2, window_bounds = array<i64: 32, 128>}, {pipeline_mode = #tpu.pipeline_mode<synchronous>, transform_indices = @transform_3, window_bounds = array<i64: 1, 128>}, {pipeline_mode = #tpu.pipeline_mode<synchronous>, transform_indices = @transform_4, window_bounds = array<i64: 128, 4>}, {transform_indices = @transform_5, window_bounds = array<i64: 2, 4, 8>}]} {
    %c0 = arith.constant 0 : index
    %c0_0 = arith.constant 0 : index
    %0 = vector.load %arg1[%c0, %c0_0] : memref<16x32xf32, #tpu.memory_space<vmem>>, vector<16x32xf32>
    %1 = arith.truncf %0 : vector<16x32xf32> to vector<16x32xbf16>
    %c0_1 = arith.constant 0 : index
    %c0_2 = arith.constant 0 : index
    %2 = vector.load %arg3[%c0_1, %c0_2] : memref<32x128xbf16, #tpu.memory_space<vmem>>, vector<32x128xbf16>
    %cst = arith.constant dense<0.000000e+00> : vector<16x128xf32>
    %3 = tpu.matmul %1, %2, %cst {dimension_numbers = #tpu.dot_dimension_numbers<[1], [0], [0], [1], [0, 0, 1, 1], [], []>} : vector<16x32xbf16>, vector<32x128xbf16>, vector<16x128xf32> -> vector<16x128xf32>
    %c0_3 = arith.constant 0 : index
    %c0_4 = arith.constant 0 : index
    %4 = vector.load %arg4[%c0_3, %c0_4] : memref<1x128xf32, #tpu.memory_space<vmem>>, vector<1x128xf32>
    %5 = vector.broadcast %4 : vector<1x128xf32> to vector<16x128xf32>
    %6 = arith.addf %3, %5 : vector<16x128xf32>
    %7 = arith.truncf %6 : vector<16x128xf32> to vector<16x128xbf16>
    %8 = math.tanh %7 : vector<16x128xbf16>
    %c0_5 = arith.constant 0 : index
    %c0_6 = arith.constant 0 : index
    %9 = vector.load %arg5[%c0_5, %c0_6] : memref<128x4xbf16, #tpu.memory_space<vmem>>, vector<128x4xbf16>
    %cst_7 = arith.constant dense<0.000000e+00> : vector<16x4xf32>
    %10 = tpu.matmul %8, %9, %cst_7 {dimension_numbers = #tpu.dot_dimension_numbers<[1], [0], [0], [1], [0, 0, 1, 1], [], []>} : vector<16x128xbf16>, vector<128x4xbf16>, vector<16x4xf32> -> vector<16x4xf32>
    %11 = vector.shape_cast %10 : vector<16x4xf32> to vector<2x8x4xf32>
    %12 = tpu.transpose %11, [0, 2, 1] : vector<2x8x4xf32> -> vector<2x4x8xf32>
    %13 = math.tanh %12 : vector<2x4x8xf32>
    %14 = arith.mulf %13, %13 : vector<2x4x8xf32>
    %cst_8 = arith.constant dense<0.000000e+00> : vector<2x8xf32>
    %15 = vector.multi_reduction <add>, %14, %cst_8 [1] : vector<2x4x8xf32> to vector<2x8xf32>
    %16 = vector.shape_cast %15 : vector<2x8xf32> to vector<2x1x8xf32>
    %17 = math.rsqrt %16 : vector<2x1x8xf32>
    %18 = vector.broadcast %17 : vector<2x1x8xf32> to vector<2x4x8xf32>
    %19 = arith.mulf %13, %18 : vector<2x4x8xf32>
    %c0_9 = arith.constant 0 : index
    %c0_10 = arith.constant 0 : index
    %c0_11 = arith.constant 0 : index
    %20 = vector.load %arg2[%c0_9, %c0_10, %c0_11] : memref<2x1x8xf32, #tpu.memory_space<vmem>>, vector<2x1x8xf32>
    %21 = vector.broadcast %20 : vector<2x1x8xf32> to vector<2x4x8xf32>
    %22 = arith.mulf %19, %21 : vector<2x4x8xf32>
    %23 = math.exp %22 : vector<2x4x8xf32>
    %cst_12 = arith.constant dense<0.000000e+00> : vector<2x4xf32>
    %24 = vector.multi_reduction <add>, %23, %cst_12 [2] : vector<2x4x8xf32> to vector<2x4xf32>
    %25 = vector.shape_cast %24 : vector<2x4xf32> to vector<2x4x1xf32>
    %26 = tpu.reciprocal %25 {approx = true} : vector<2x4x1xf32> -> vector<2x4x1xf32>
    %27 = vector.broadcast %26 : vector<2x4x1xf32> to vector<2x4x8xf32>
    %28 = arith.mulf %23, %27 : vector<2x4x8xf32>
    %29 = vector.broadcast %20 : vector<2x1x8xf32> to vector<2x4x8xf32>
    %30 = arith.mulf %28, %29 : vector<2x4x8xf32>
    %cst_13 = arith.constant dense<0.000000e+00> : vector<2x4xf32>
    %31 = vector.multi_reduction <add>, %30, %cst_13 [2] : vector<2x4x8xf32> to vector<2x4xf32>
    %32 = vector.shape_cast %31 : vector<2x4xf32> to vector<2x4x1xf32>
    %cst_14 = arith.constant 9.99999982E-14 : f32
    %33 = vector.broadcast %cst_14 : f32 to vector<2x4x1xf32>
    %34 = arith.addf %32, %33 : vector<2x4x1xf32>
    %35 = vector.broadcast %34 : vector<2x4x1xf32> to vector<2x4x8xf32>
    %36 = arith.divf %30, %35 : vector<2x4x8xf32>
    %c0_15 = arith.constant 0 : index
    %c0_16 = arith.constant 0 : index
    %c0_17 = arith.constant 0 : index
    %37 = vector.load %arg6[%c0_15, %c0_16, %c0_17] : memref<2x4x8xf32, #tpu.memory_space<vmem>>, vector<2x4x8xf32>
    tpu.vector_store %arg6[%c0_15, %c0_16, %c0_17], %36 {strides = array<i32>} : memref<2x4x8xf32, #tpu.memory_space<vmem>>, vector<2x4x8xf32>,
    return
  }
  func.func @transform_0(%arg0: i32) -> (i32, i32) {
    %c0_i32 = arith.constant 0 : i32
    %c0_i32_0 = arith.constant 0 : i32
    return %arg0, %c0_i32 : i32, i32
  }
  func.func @transform_1(%arg0: i32) -> (i32, i32, i32) {
    %c0_i32 = arith.constant 0 : i32
    %c0_i32_0 = arith.constant 0 : i32
    %c0_i32_1 = arith.constant 0 : i32
    return %arg0, %c0_i32, %c0_i32_0 : i32, i32, i32
  }
  func.func @transform_2(%arg0: i32) -> (i32, i32) {
    %c0_i32 = arith.constant 0 : i32
    %c0_i32_0 = arith.constant 0 : i32
    %c0_i32_1 = arith.constant 0 : i32
    return %c0_i32, %c0_i32_0 : i32, i32
  }
  func.func @transform_3(%arg0: i32) -> (i32, i32) {
    %c0_i32 = arith.constant 0 : i32
    %c0_i32_0 = arith.constant 0 : i32
    %c0_i32_1 = arith.constant 0 : i32
    return %c0_i32, %c0_i32_0 : i32, i32
  }
  func.func @transform_4(%arg0: i32) -> (i32, i32) {
    %c0_i32 = arith.constant 0 : i32
    %c0_i32_0 = arith.constant 0 : i32
    %c0_i32_1 = arith.constant 0 : i32
    return %c0_i32, %c0_i32_0 : i32, i32
  }
  func.func @transform_5(%arg0: i32) -> (i32, i32, i32) {
    %c0_i32 = arith.constant 0 : i32
    %c0_i32_0 = arith.constant 0 : i32
    %c0_i32_1 = arith.constant 0 : i32
    return %arg0, %c0_i32, %c0_i32_0 : i32, i32, i32
  }
}

module attributes {stable_mosaic.version = 11 : i64} {
  func.func @fbma_kernel(%arg0: i32, %arg1: memref<16x32xf32, #tpu.memory_space<vmem>>, %arg2: memref<2x1x8xf32, #tpu.memory_space<vmem>>, %arg3: memref<32x128xbf16, #tpu.memory_space<vmem>>, %arg4: memref<1x128xf32, #tpu.memory_space<vmem>>, %arg5: memref<128x4xbf16, #tpu.memory_space<vmem>>, %arg6: memref<2x4x8xf32, #tpu.memory_space<vmem>>) attributes {dimension_semantics = [#tpu.dimension_semantics<parallel>], iteration_bounds = array<i64: 1>, scalar_prefetch = 0 : i64, scratch_operands = 0 : i64, tpu.core_type = #tpu.core_type<tc>, window_params = [{transform_indices = @transform_0, window_bounds = array<i64: 16, 32>}, {transform_indices = @transform_1, window_bounds = array<i64: 2, 1, 8>}, {pipeline_mode = #tpu.pipeline_mode<synchronous>, transform_indices = @transform_2, window_bounds = array<i64: 32, 128>}, {pipeline_mode = #tpu.pipeline_mode<synchronous>, transform_indices = @transform_3, window_bounds = array<i64: 1, 128>}, {pipeline_mode = #tpu.pipeline_mode<synchronous>, transform_indices = @transform_4, window_bounds = array<i64: 128, 4>}, {transform_indices = @transform_5, window_bounds = array<i64: 2, 4, 8>}]} {
    %c0 = arith.constant 0 : index
    %c0_0 = arith.constant 0 : index
    %0 = vector.load %arg1[%c0, %c0_0] : memref<16x32xf32, #tpu.memory_space<vmem>>, vector<16x32xf32>
    %1 = arith.truncf %0 : vector<16x32xf32> to vector<16x32xbf16>
    %c0_1 = arith.constant 0 : index
    %c0_2 = arith.constant 0 : index
    %2 = vector.load %arg3[%c0_1, %c0_2] : memref<32x128xbf16, #tpu.memory_space<vmem>>, vector<32x128xbf16>
    %cst = arith.constant dense<0.000000e+00> : vector<16x128xf32>
    %3 = tpu.matmul %1, %2, %cst {dimension_numbers = #tpu.dot_dimension_numbers<[1], [0], [0], [1], [0, 0, 1, 1], [], []>} : vector<16x32xbf16>, vector<32x128xbf16>, vector<16x128xf32> -> vector<16x128xf32>
    %c0_3 = arith.constant 0 : index
    %c0_4 = arith.constant 0 : index
    %4 = vector.load %arg4[%c0_3, %c0_4] : memref<1x128xf32, #tpu.memory_space<vmem>>, vector<1x128xf32>
    %5 = vector.broadcast %4 : vector<1x128xf32> to vector<16x128xf32>
    %6 = arith.addf %3, %5 : vector<16x128xf32>
    %7 = arith.truncf %6 : vector<16x128xf32> to vector<16x128xbf16>
    %8 = math.tanh %7 : vector<16x128xbf16>
    %c0_5 = arith.constant 0 : index
    %c0_6 = arith.constant 0 : index
    %9 = vector.load %arg5[%c0_5, %c0_6] : memref<128x4xbf16, #tpu.memory_space<vmem>>, vector<128x4xbf16>
    %cst_7 = arith.constant dense<0.000000e+00> : vector<16x4xf32>
    %10 = tpu.matmul %8, %9, %cst_7 {dimension_numbers = #tpu.dot_dimension_numbers<[1], [0], [0], [1], [0, 0, 1, 1], [], []>} : vector<16x128xbf16>, vector<128x4xbf16>, vector<16x4xf32> -> vector<16x4xf32>
    %11 = vector.shape_cast %10 : vector<16x4xf32> to vector<2x8x4xf32>
    %12 = tpu.transpose %11, [0, 2, 1] : vector<2x8x4xf32> -> vector<2x4x8xf32>
    %13 = math.tanh %12 : vector<2x4x8xf32>
    %14 = arith.mulf %13, %13 : vector<2x4x8xf32>
    %cst_8 = arith.constant dense<0.000000e+00> : vector<2x8xf32>
    %15 = vector.multi_reduction <add>, %14, %cst_8 [1] : vector<2x4x8xf32> to vector<2x8xf32>
    %16 = vector.shape_cast %15 : vector<2x8xf32> to vector<2x1x8xf32>
    %17 = math.rsqrt %16 : vector<2x1x8xf32>
    %18 = vector.broadcast %17 : vector<2x1x8xf32> to vector<2x4x8xf32>
    %19 = arith.mulf %13, %18 : vector<2x4x8xf32>
    %c0_9 = arith.constant 0 : index
    %c0_10 = arith.constant 0 : index
    %c0_11 = arith.constant 0 : index
    %20 = vector.load %arg2[%c0_9, %c0_10, %c0_11] : memref<2x1x8xf32, #tpu.memory_space<vmem>>, vector<2x1x8xf32>
    %21 = vector.broadcast %20 : vector<2x1x8xf32> to vector<2x4x8xf32>
    %22 = arith.mulf %19, %21 : vector<2x4x8xf32>
    %23 = math.exp %22 : vector<2x4x8xf32>
    %cst_12 = arith.constant dense<0.000000e+00> : vector<2x4xf32>
    %24 = vector.multi_reduction <add>, %23, %cst_12 [2] : vector<2x4x8xf32> to vector<2x4xf32>
    %25 = vector.shape_cast %24 : vector<2x4xf32> to vector<2x4x1xf32>
    %26 = tpu.reciprocal %25 {approx = true} : vector<2x4x1xf32> -> vector<2x4x1xf32>
    %27 = vector.broadcast %26 : vector<2x4x1xf32> to vector<2x4x8xf32>
    %28 = arith.mulf %23, %27 : vector<2x4x8xf32>
    %29 = vector.broadcast %20 : vector<2x1x8xf32> to vector<2x4x8xf32>
    %30 = arith.mulf %28, %29 : vector<2x4x8xf32>
    %cst_13 = arith.constant dense<0.000000e+00> : vector<2x4xf32>
    %31 = vector.multi_reduction <add>, %30, %cst_13 [2] : vector<2x4x8xf32> to vector<2x4xf32>
    %32 = vector.shape_cast %31 : vector<2x4xf32> to vector<2x4x1xf32>
    %cst_14 = arith.constant 9.99999982E-14 : f32
    %33 = vector.broadcast %cst_14 : f32 to vector<2x4x1xf32>
    %34 = arith.addf %32, %33 : vector<2x4x1xf32>
    %35 = vector.broadcast %34 : vector<2x4x1xf32> to vector<2x4x8xf32>
    %36 = arith.divf %30, %35 : vector<2x4x8xf32>
    %c0_15 = arith.constant 0 : index
    %c0_16 = arith.constant 0 : index
    %c0_17 = arith.constant 0 : index
    %37 = vector.load %arg6[%c0_15, %c0_16, %c0_17] : memref<2x4x8xf32, #tpu.memory_space<vmem>>, vector<2x4x8xf32>
    tpu.vector_store %arg6[%c0_15, %c0_16, %c0_17], %36 {strides = array<i32>} : memref<2x4x8xf32, #tpu.memory_space<vmem>>, vector<2x4x8xf32>,
    return
  }
  func.func @transform_0(%arg0: i32) -> (i32, i32) {
    %c0_i32 = arith.constant 0 : i32
    %c0_i32_0 = arith.constant 0 : i32
    return %arg0, %c0_i32 : i32, i32
  }
  func.func @transform_1(%arg0: i32) -> (i32, i32, i32) {
    %c0_i32 = arith.constant 0 : i32
    %c0_i32_0 = arith.constant 0 : i32
    %c0_i32_1 = arith.constant 0 : i32
    return %arg0, %c0_i32, %c0_i32_0 : i32, i32, i32
  }
  func.func @transform_2(%arg0: i32) -> (i32, i32) {
    %c0_i32 = arith.constant 0 : i32
    %c0_i32_0 = arith.constant 0 : i32
    %c0_i32_1 = arith.constant 0 : i32
    return %c0_i32, %c0_i32_0 : i32, i32
  }
  func.func @transform_3(%arg0: i32) -> (i32, i32) {
    %c0_i32 = arith.constant 0 : i32
    %c0_i32_0 = arith.constant 0 : i32
    %c0_i32_1 = arith.constant 0 : i32
    return %c0_i32, %c0_i32_0 : i32, i32
  }
  func.func @transform_4(%arg0: i32) -> (i32, i32) {
    %c0_i32 = arith.constant 0 : i32
    %c0_i32_0 = arith.constant 0 : i32
    %c0_i32_1 = arith.constant 0 : i32
    return %c0_i32, %c0_i32_0 : i32, i32
  }
  func.func @transform_5(%arg0: i32) -> (i32, i32, i32) {
    %c0_i32 = arith.constant 0 : i32
    %c0_i32_0 = arith.constant 0 : i32
    %c0_i32_1 = arith.constant 0 : i32
    return %arg0, %c0_i32, %c0_i32_0 : i32, i32, i32
  }
}

</mosaic_0001>

<llo_original>
// kernel: tpu_custom_call.1
$region0: #{tpu_custom_call.1}
  #allocation0 [shape = 'u32[]', space=smem, size = 0x4, offset = 0x4, fixed_abs, tag = 'smem constant byte address 0x4 - core index']
  #allocation1 [shape = 'u32[144,128]{1,0:T(1,128)}', space=vmem, size = 0x12000, scoped, tag = 'internal scratch']
  %s0 = inlined_call_operand.vmem [shape: f32[16,32], index: 0, kind: input, shape index: {}]
  %s1 = inlined_call_operand.vmem [shape: f32[2,1,8], index: 1, kind: input, shape index: {}]
  %s2 = inlined_call_operand.vmem [shape: bf16[32,128], index: 2, kind: input, shape index: {}]
  %s3 = inlined_call_operand.vmem [shape: f32[1,128], index: 3, kind: input, shape index: {}]
  %s4 = inlined_call_operand.vmem [shape: bf16[128,4], index: 4, kind: input, shape index: {}]
  %s5 = inlined_call_operand.hbm [shape: f32[2,4,8], index: 5, kind: output, shape index: {}]
  %s6 = sld [smem:[#allocation0]]
  $region30: #{tpu_custom_call.1} parent=0
    _
  %s8 = ssub.s32 1, %s6
  %s9 = scalar_select 0, %s8, %s6
  $region1: #{tpu_custom_call.1} parent=0
    #allocation2 [shape = 'u8[4096]{0}', space=vmem, size = 0x1000, scoped, tag = 'output window, operand 0, single buffered']
    #allocation3 [shape = 's32[1]{0}', space=sflag, size = 0x4, scoped, tag = 'scoped memory for tpu_custom_call.1']
    %10 = vsyncpa [#allocation3], 0
    // Predicated region
    $region2: #{tpu_custom_call.1} parent=1 // pred_check
      _
    $region3: #{tpu_custom_call.1} parent=1 // pred_check_branch
      %12 = sbr.rel (0) target = $region5
    $region4: #{tpu_custom_call.1} parent=1 // pred_region
      _
    $region5: #{tpu_custom_call.1} parent=1 // pred_fallthru
      _
    // Predicated region
    $region6: #{tpu_custom_call.1} parent=1 // pred_check
      _
    $region7: #{tpu_custom_call.1} parent=1 // pred_check_branch
      %14 = sbr.rel (0) target = $region9
    $region8: #{tpu_custom_call.1} parent=1 // pred_region
      _
    $region9: #{tpu_custom_call.1} parent=1 // pred_fallthru
      _
    // Predicated region
    $region10: #{tpu_custom_call.1} parent=1 // pred_check
      _
    $region11: #{tpu_custom_call.1} parent=1 // pred_check_branch
      %16 = sbr.rel (0) target = $region13
    $region12: #{tpu_custom_call.1} parent=1 // pred_region
      _
    $region13: #{tpu_custom_call.1} parent=1 // pred_fallthru
      _
    // Predicated region
    $region14: #{tpu_custom_call.1} parent=1 // pred_check
      _
    $region15: #{tpu_custom_call.1} parent=1 // pred_check_branch
      %18 = sbr.rel (0) target = $region17
    $region16: #{tpu_custom_call.1} parent=1 // pred_region
      _
    $region17: #{tpu_custom_call.1} parent=1 // pred_fallthru
      _
    // Predicated region
    $region18: #{tpu_custom_call.1} parent=1 // pred_check
      _
    $region19: #{tpu_custom_call.1} parent=1 // pred_check_branch
      %20 = sbr.rel (0) target = $region21
    $region20: #{tpu_custom_call.1} parent=1 // pred_region
      _
    $region21: #{tpu_custom_call.1} parent=1 // pred_fallthru
      _
    %v22 = vld [vmem:[%s0] sm:$0xff]
    %v23 = vld [vmem:[%s0 + $0x8] sm:$0xff]
    %v24 = vpack.c.bf16 %v23, %v22
    %v25 = vld [vmem:[%s2] sm:$0xf]
    %v26 = vld [vmem:[%s2 + $0x4] sm:$0xf]
    %v27 = vld [vmem:[%s2 + $0x8] sm:$0xf]
    %v28 = vld [vmem:[%s2 + $0xc] sm:$0xf]
    %v29 = vld [vmem:[%s3] sm:$0x1]
    %v31 = vlaneseq
    %v32 = vshrl.u32 %v31, 7
    %v33 = vsub.s32 0, %v32
    %v34 = vrot.slane %v29, %v33
    %v40 = vunpack.c.l.b16 %v25
    %v41 = vunpack.c.l.b16 %v26
    %v42 = vunpack.c.l.b16 %v27
    %v43 = vunpack.c.l.b16 %v28
    %v44 = vpack.c.b16 %v41, %v40
    %v45 = vpack.c.b16 %v43, %v42
    %vm48 = vcmask 261120
    %v50 = vsel %vm48, %v24, 0
    %52 = vmatprep.subr.bf16.mxu0 0
    %53 = vmatpush1.bf16.msra.mxu0 %v44
    %54 = vmatprep.subr.bf16.mxu0 0
    %55 = vmatpush1.bf16.msra.mxu0 %v45
    %56 = vmatprep.subr.bf16.mxu0 0
    %57 = vmatpush1.bf16.msra.mxu0 0
    %58 = vmatprep.subr.bf16.mxu0 0
    %59 = vmatpush1.bf16.msra.mxu0 0
    %60 = vmatprep.subr.bf16.mxu0 0
    %61 = vmatpush1.bf16.msra.mxu0 0
    %62 = vmatprep.subr.bf16.mxu0 0
    %63 = vmatpush1.bf16.msra.mxu0 0
    %64 = vmatprep.subr.bf16.mxu0 0
    %65 = vmatpush1.bf16.msra.mxu0 0
    %66 = vmatprep.subr.bf16.mxu0 0
    %67 = vmatpush1.bf16.msra.mxu0 0
    %68 = vmatprep.subr.bf16.mxu0 0
    %69 = vmatpush1.bf16.msra.mxu0 0
    %70 = vmatprep.subr.bf16.mxu0 0
    %71 = vmatpush1.bf16.msra.mxu0 0
    %72 = vmatprep.subr.bf16.mxu0 0
    %73 = vmatpush1.bf16.msra.mxu0 0
    %74 = vmatprep.subr.bf16.mxu0 0
    %75 = vmatpush1.bf16.msra.mxu0 0
    %76 = vmatprep.subr.bf16.mxu0 0
    %77 = vmatpush1.bf16.msra.mxu0 0
    %78 = vmatprep.subr.bf16.mxu0 0
    %79 = vmatpush1.bf16.msra.mxu0 0
    %80 = vmatprep.subr.bf16.mxu0 0
    %81 = vmatpush1.bf16.msra.mxu0 0
    %82 = vmatprep.subr.bf16.mxu0 0
    %83 = vmatpush1.bf16.msra.mxu0 0
    %84 = vmatprep.mubr.bf16.mxu0 0
    %85 = vmatmul.mubr.bf16.gmra.mrb[0].mxu0 %v50
    %v86 = vpop.f32.mrb[0].mxu0
    %v87 = vadd.f32 %v34, %v86
    %v88 = vpop.f32.mrb[0].mxu0
    %v89 = vpop.f32.mrb[0].mxu0
    %v90 = vadd.f32 %v34, %v89
    %v91 = vpop.f32.mrb[0].mxu0
    %92 = vdwg.mxu0
    %v93 = vpack.c.bf16 %v90, %v87
    %v94 = vtanh.bf16.pop %v93
    %v95 = vld [vmem:[%s4] sm:$0xf]
    %v96 = vld [vmem:[%s4 + $0x4] sm:$0xf]
    %v97 = vld [vmem:[%s4 + $0x8] sm:$0xf]
    %v98 = vld [vmem:[%s4 + $0xc] sm:$0xf]
    %v99 = vld [vmem:[%s4 + $0x10] sm:$0xf]
    %v100 = vld [vmem:[%s4 + $0x14] sm:$0xf]
    %v101 = vld [vmem:[%s4 + $0x18] sm:$0xf]
    %v102 = vld [vmem:[%s4 + $0x1c] sm:$0xf]
    %v103 = vld [vmem:[%s4 + $0x20] sm:$0xf]
    %v104 = vld [vmem:[%s4 + $0x24] sm:$0xf]
    %v105 = vld [vmem:[%s4 + $0x28] sm:$0xf]
    %v106 = vld [vmem:[%s4 + $0x2c] sm:$0xf]
    %v107 = vld [vmem:[%s4 + $0x30] sm:$0xf]
    %v108 = vld [vmem:[%s4 + $0x34] sm:$0xf]
    %v109 = vld [vmem:[%s4 + $0x38] sm:$0xf]
    %v110 = vld [vmem:[%s4 + $0x3c] sm:$0xf]
    %v127 = vunpack.c.l.b16 %v95
    %v128 = vunpack.c.l.b16 %v96
    %v129 = vunpack.c.l.b16 %v97
    %v130 = vunpack.c.l.b16 %v98
    %v131 = vunpack.c.l.b16 %v99
    %v132 = vunpack.c.l.b16 %v100
    %v133 = vunpack.c.l.b16 %v101
    %v134 = vunpack.c.l.b16 %v102
    %v135 = vunpack.c.l.b16 %v103
    %v136 = vunpack.c.l.b16 %v104
    %v137 = vunpack.c.l.b16 %v105
    %v138 = vunpack.c.l.b16 %v106
    %v139 = vunpack.c.l.b16 %v107
    %v140 = vunpack.c.l.b16 %v108
    %v141 = vunpack.c.l.b16 %v109
    %v142 = vunpack.c.l.b16 %v110
    %v143 = vpack.c.b16 %v128, %v127
    %v144 = vpack.c.b16 %v130, %v129
    %v145 = vpack.c.b16 %v132, %v131
    %v146 = vpack.c.b16 %v134, %v133
    %v147 = vpack.c.b16 %v136, %v135
    %v148 = vpack.c.b16 %v138, %v137
    %v149 = vpack.c.b16 %v140, %v139
    %v150 = vpack.c.b16 %v142, %v141
    %159 = vmatprep.subr.bf16.mxu0 0
    %160 = vmatpush1.bf16.msra.mxu0 %v143
    %161 = vmatprep.subr.bf16.mxu0 0
    %162 = vmatpush1.bf16.msra.mxu0 %v144
    %163 = vmatprep.subr.bf16.mxu0 0
    %164 = vmatpush1.bf16.msra.mxu0 %v145
    %165 = vmatprep.subr.bf16.mxu0 0
    %166 = vmatpush1.bf16.msra.mxu0 %v146
    %167 = vmatprep.subr.bf16.mxu0 0
    %168 = vmatpush1.bf16.msra.mxu0 %v147
    %169 = vmatprep.subr.bf16.mxu0 0
    %170 = vmatpush1.bf16.msra.mxu0 %v148
    %171 = vmatprep.subr.bf16.mxu0 0
    %172 = vmatpush1.bf16.msra.mxu0 %v149
    %173 = vmatprep.subr.bf16.mxu0 0
    %174 = vmatpush1.bf16.msra.mxu0 %v150
    %175 = vmatprep.subr.bf16.mxu0 0
    %176 = vmatpush1.bf16.msra.mxu0 0
    %177 = vmatprep.subr.bf16.mxu0 0
    %178 = vmatpush1.bf16.msra.mxu0 0
    %179 = vmatprep.subr.bf16.mxu0 0
    %180 = vmatpush1.bf16.msra.mxu0 0
    %181 = vmatprep.subr.bf16.mxu0 0
    %182 = vmatpush1.bf16.msra.mxu0 0
    %183 = vmatprep.subr.bf16.mxu0 0
    %184 = vmatpush1.bf16.msra.mxu0 0
    %185 = vmatprep.subr.bf16.mxu0 0
    %186 = vmatpush1.bf16.msra.mxu0 0
    %187 = vmatprep.subr.bf16.mxu0 0
    %188 = vmatpush1.bf16.msra.mxu0 0
    %189 = vmatprep.subr.bf16.mxu0 0
    %190 = vmatpush1.bf16.msra.mxu0 0
    %191 = vmatprep.mubr.bf16.mxu0 0
    %192 = vmatmul.mubr.bf16.gmra.mrb[0].mxu0 %v94
    %v193 = vpop.f32.mrb[0].mxu0
    %v194 = vadd.f32 0.0, %v193
    %v195 = vpop.f32.mrb[0].mxu0
    %v196 = vpop.f32.mrb[0].mxu0
    %v197 = vadd.f32 0.0, %v196
    %v198 = vpop.f32.mrb[0].mxu0
    %199 = vdwg.mxu0
    %200 = vxpose.xlu0.b32.start [1/16] %v194, 128
    %201 = vxpose.xlu0.b32.cont [2/16] 0.0, 128
    %202 = vxpose.xlu0.b32.cont [3/16] 0.0, 128
    %203 = vxpose.xlu0.b32.cont [4/16] 0.0, 128
    %204 = vxpose.xlu0.b32.cont [5/16] 0.0, 128
    %205 = vxpose.xlu0.b32.cont [6/16] 0.0, 128
    %206 = vxpose.xlu0.b32.cont [7/16] 0.0, 128
    %207 = vxpose.xlu0.b32.cont [8/16] 0.0, 128
    %208 = vxpose.xlu0.b32.cont [9/16] 0.0, 128
    %209 = vxpose.xlu0.b32.cont [10/16] 0.0, 128
    %210 = vxpose.xlu0.b32.cont [11/16] 0.0, 128
    %211 = vxpose.xlu0.b32.cont [12/16] 0.0, 128
    %212 = vxpose.xlu0.b32.cont [13/16] 0.0, 128
    %213 = vxpose.xlu0.b32.cont [14/16] 0.0, 128
    %214 = vxpose.xlu0.b32.cont [15/16] 0.0, 128
    %215 = vxpose.xlu0.b32.end [16/16] 0.0, 128
    %v216 = vpop.trf.xlu0
    %v217 = vpop.trf.xlu0
    %v218 = vpop.trf.xlu0
    %v219 = vpop.trf.xlu0
    %v220 = vpop.trf.xlu0
    %v221 = vpop.trf.xlu0
    %v222 = vpop.trf.xlu0
    %v223 = vpop.trf.xlu0
    %v224 = vpop.trf.xlu0
    %v225 = vpop.trf.xlu0
    %v226 = vpop.trf.xlu0
    %v227 = vpop.trf.xlu0
    %v228 = vpop.trf.xlu0
    %v229 = vpop.trf.xlu0
    %v230 = vpop.trf.xlu0
    %v231 = vpop.trf.xlu0
    %232 = vxpose.xlu0.b32.start [1/16] %v197, 128
    %233 = vxpose.xlu0.b32.cont [2/16] 0.0, 128
    %234 = vxpose.xlu0.b32.cont [3/16] 0.0, 128
    %235 = vxpose.xlu0.b32.cont [4/16] 0.0, 128
    %236 = vxpose.xlu0.b32.cont [5/16] 0.0, 128
    %237 = vxpose.xlu0.b32.cont [6/16] 0.0, 128
    %238 = vxpose.xlu0.b32.cont [7/16] 0.0, 128
    %239 = vxpose.xlu0.b32.cont [8/16] 0.0, 128
    %240 = vxpose.xlu0.b32.cont [9/16] 0.0, 128
    %241 = vxpose.xlu0.b32.cont [10/16] 0.0, 128
    %242 = vxpose.xlu0.b32.cont [11/16] 0.0, 128
    %243 = vxpose.xlu0.b32.cont [12/16] 0.0, 128
    %244 = vxpose.xlu0.b32.cont [13/16] 0.0, 128
    %245 = vxpose.xlu0.b32.cont [14/16] 0.0, 128
    %246 = vxpose.xlu0.b32.cont [15/16] 0.0, 128
    %247 = vxpose.xlu0.b32.end [16/16] 0.0, 128
    %v248 = vpop.trf.xlu0
    %v249 = vpop.trf.xlu0
    %v250 = vpop.trf.xlu0
    %v251 = vpop.trf.xlu0
    %v252 = vpop.trf.xlu0
    %v253 = vpop.trf.xlu0
    %v254 = vpop.trf.xlu0
    %v255 = vpop.trf.xlu0
    %v256 = vpop.trf.xlu0
    %v257 = vpop.trf.xlu0
    %v258 = vpop.trf.xlu0
    %v259 = vpop.trf.xlu0
    %v260 = vpop.trf.xlu0
    %v261 = vpop.trf.xlu0
    %v262 = vpop.trf.xlu0
    %v263 = vpop.trf.xlu0
    %v264 = vtanh.pop %v216
    %v265 = vtanh.pop %v248
    %v266 = vmul.f32 %v264, %v264
    %v267 = vmul.f32 %v265, %v265
    %vm268 = vcmask 60416
    %v269 = vsel %vm268, %v266, 0.0
    %v270 = vrot.slane %v269, 4
    %v271 = vadd.f32 %v269, %v270
    %v272 = vrot.slane %v271, 2
    %v273 = vadd.f32 %v271, %v272
    %v274 = vrot.slane %v273, 1
    %v275 = vadd.f32 %v273, %v274
    %v276 = vsel %vm268, %v267, 0.0
    %v277 = vrot.slane %v276, 4
    %v278 = vadd.f32 %v276, %v277
    %v279 = vrot.slane %v278, 2
    %v280 = vadd.f32 %v278, %v279
    %v281 = vrot.slane %v280, 1
    %v282 = vadd.f32 %v280, %v281
    %v283 = vrsqrt.pop %v275
    %v284 = vrsqrt.pop %v282
    %v285 = vmul.f32 %v264, %v283
    %v286 = vmul.f32 %v265, %v284
    %v287 = vld [vmem:[%s1] sm:$0x1]
    %v288 = vld [vmem:[%s1 + $0x1] sm:$0x1]
    %v291 = vlaneseq
    %v292 = vshrl.u32 %v291, 7
    %v293 = vsub.s32 0, %v292
    %v294 = vrot.slane %v287, %v293
    %v295 = vlaneseq
    %v296 = vshrl.u32 %v295, 7
    %v297 = vsub.s32 0, %v296
    %v298 = vrot.slane %v288, %v297
    %v301 = vmul.f32 %v285, %v294
    %v302 = vmul.f32 %v286, %v298
    %v303 = vmul.f32 %v301, 1.442695
    %v304 = vpow.pop %v303
    %v305 = vmul.f32 %v302, 1.442695
    %v306 = vpow.pop %v305
    %v307 = vsel %vm268, %v304, 0.0
    %308 = vadd.xlane.f32.xlu0 %v307
    %v309 = vpop.xlane.xlu0 %308
    %v310 = vsel %vm268, %v306, 0.0
    %311 = vadd.xlane.f32.xlu0 %v310
    %v312 = vpop.xlane.xlu0 %311
    %v313 = vrcp.pop %v309
    %v314 = vrcp.pop %v312
    %v315 = vmul.f32 %v304, %v313
    %v316 = vmul.f32 %v306, %v314
    %v317 = vmul.f32 %v315, %v294
    %v318 = vmul.f32 %v316, %v298
    %v319 = vsel %vm268, %v317, 0.0
    %320 = vadd.xlane.f32.xlu0 %v319
    %v321 = vpop.xlane.xlu0 %320
    %v322 = vsel %vm268, %v318, 0.0
    %323 = vadd.xlane.f32.xlu0 %v322
    %v324 = vpop.xlane.xlu0 %323
    %v325 = vadd.f32 %v321, 1e-13
    %v326 = vadd.f32 %v324, 1e-13
    %v327 = vrcp.pop %v325
    %v328 = vmul.f32 %v317, %v327
    %v329 = vrcp.pop %v326
    %v330 = vmul.f32 %v318, %v329
    %331 = vst.msk [vmem:[#allocation2] sm:$0xf] %vm268, %v328
    %332 = vst.msk [vmem:[#allocation2 + $0x4] sm:$0xf] %vm268, %v330
    // Predicated region
    $region22: #{tpu_custom_call.1} parent=1 // pred_check
      _
    $region23: #{tpu_custom_call.1} parent=1 // pred_check_branch
      %334 = sbr.rel (0) target = $region25
    $region24: #{tpu_custom_call.1} parent=1 // pred_region
      %s336 = ssub.s32 128, 128
      %337 = vsyncadd [#allocation3], %s336
      %s338 = sshll.u32 [#allocation2], 4
      %s339 = int_to_ptr.vmem [resolvable:$true] %s338
      %344 = dma.vmem_to_hbm [thread:$0]  %s339, 128, %s5, [#allocation3], 64, 64, 4
    $region25: #{tpu_custom_call.1} parent=1 // pred_fallthru
      _
    // Predicated region
    $region26: #{tpu_custom_call.1} parent=1 // pred_check
      _
    $region27: #{tpu_custom_call.1} parent=1 // pred_check_branch
      %346 = sbr.rel (0) target = $region29
    $region28: #{tpu_custom_call.1} parent=1 // pred_region
      %347 = dma.done [#allocation3], 128
    $region29: #{tpu_custom_call.1} parent=1 // pred_fallthru
      _
    %348 = vsyncpa [#allocation3], 1

// kernel: tpu_custom_call.1
$region0: #{tpu_custom_call.1}
  #allocation0 [shape = 'u32[]', space=smem, size = 0x4, offset = 0x4, fixed_abs, tag = 'smem constant byte address 0x4 - core index']
  #allocation1 [shape = 'u32[144,128]{1,0:T(1,128)}', space=vmem, size = 0x12000, scoped, tag = 'internal scratch']
  %s0 = inlined_call_operand.vmem [shape: f32[16,32], index: 0, kind: input, shape index: {}]
  %s1 = inlined_call_operand.vmem [shape: f32[2,1,8], index: 1, kind: input, shape index: {}]
  %s2 = inlined_call_operand.vmem [shape: bf16[32,128], index: 2, kind: input, shape index: {}]
  %s3 = inlined_call_operand.vmem [shape: f32[1,128], index: 3, kind: input, shape index: {}]
  %s4 = inlined_call_operand.vmem [shape: bf16[128,4], index: 4, kind: input, shape index: {}]
  %s5 = inlined_call_operand.hbm [shape: f32[2,4,8], index: 5, kind: output, shape index: {}]
  %s6 = sld [smem:[#allocation0]]
  $region30: #{tpu_custom_call.1} parent=0
    _
  %s8 = ssub.s32 1, %s6
  %s9 = scalar_select 0, %s8, %s6
  $region1: #{tpu_custom_call.1} parent=0
    #allocation2 [shape = 'u8[4096]{0}', space=vmem, size = 0x1000, scoped, tag = 'output window, operand 0, single buffered']
    #allocation3 [shape = 's32[1]{0}', space=sflag, size = 0x4, scoped, tag = 'scoped memory for tpu_custom_call.1']
    %10 = vsyncpa [#allocation3], 0
    // Predicated region
    $region2: #{tpu_custom_call.1} parent=1 // pred_check
      _
    $region3: #{tpu_custom_call.1} parent=1 // pred_check_branch
      %12 = sbr.rel (0) target = $region5
    $region4: #{tpu_custom_call.1} parent=1 // pred_region
      _
    $region5: #{tpu_custom_call.1} parent=1 // pred_fallthru
      _
    // Predicated region
    $region6: #{tpu_custom_call.1} parent=1 // pred_check
      _
    $region7: #{tpu_custom_call.1} parent=1 // pred_check_branch
      %14 = sbr.rel (0) target = $region9
    $region8: #{tpu_custom_call.1} parent=1 // pred_region
      _
    $region9: #{tpu_custom_call.1} parent=1 // pred_fallthru
      _
    // Predicated region
    $region10: #{tpu_custom_call.1} parent=1 // pred_check
      _
    $region11: #{tpu_custom_call.1} parent=1 // pred_check_branch
      %16 = sbr.rel (0) target = $region13
    $region12: #{tpu_custom_call.1} parent=1 // pred_region
      _
    $region13: #{tpu_custom_call.1} parent=1 // pred_fallthru
      _
    // Predicated region
    $region14: #{tpu_custom_call.1} parent=1 // pred_check
      _
    $region15: #{tpu_custom_call.1} parent=1 // pred_check_branch
      %18 = sbr.rel (0) target = $region17
    $region16: #{tpu_custom_call.1} parent=1 // pred_region
      _
    $region17: #{tpu_custom_call.1} parent=1 // pred_fallthru
      _
    // Predicated region
    $region18: #{tpu_custom_call.1} parent=1 // pred_check
      _
    $region19: #{tpu_custom_call.1} parent=1 // pred_check_branch
      %20 = sbr.rel (0) target = $region21
    $region20: #{tpu_custom_call.1} parent=1 // pred_region
      _
    $region21: #{tpu_custom_call.1} parent=1 // pred_fallthru
      _
    %v22 = vld [vmem:[%s0] sm:$0xff]
    %v23 = vld [vmem:[%s0 + $0x8] sm:$0xff]
    %v24 = vpack.c.bf16 %v23, %v22
    %v25 = vld [vmem:[%s2] sm:$0xf]
    %v26 = vld [vmem:[%s2 + $0x4] sm:$0xf]
    %v27 = vld [vmem:[%s2 + $0x8] sm:$0xf]
    %v28 = vld [vmem:[%s2 + $0xc] sm:$0xf]
    %v29 = vld [vmem:[%s3] sm:$0x1]
    %v31 = vlaneseq
    %v32 = vshrl.u32 %v31, 7
    %v33 = vsub.s32 0, %v32
    %v34 = vrot.slane %v29, %v33
    %v40 = vunpack.c.l.b16 %v25
    %v41 = vunpack.c.l.b16 %v26
    %v42 = vunpack.c.l.b16 %v27
    %v43 = vunpack.c.l.b16 %v28
    %v44 = vpack.c.b16 %v41, %v40
    %v45 = vpack.c.b16 %v43, %v42
    %vm48 = vcmask 261120
    %v50 = vsel %vm48, %v24, 0
    %52 = vmatprep.subr.bf16.mxu0 0
    %53 = vmatpush1.bf16.msra.mxu0 %v44
    %54 = vmatprep.subr.bf16.mxu0 0
    %55 = vmatpush1.bf16.msra.mxu0 %v45
    %56 = vmatprep.subr.bf16.mxu0 0
    %57 = vmatpush1.bf16.msra.mxu0 0
    %58 = vmatprep.subr.bf16.mxu0 0
    %59 = vmatpush1.bf16.msra.mxu0 0
    %60 = vmatprep.subr.bf16.mxu0 0
    %61 = vmatpush1.bf16.msra.mxu0 0
    %62 = vmatprep.subr.bf16.mxu0 0
    %63 = vmatpush1.bf16.msra.mxu0 0
    %64 = vmatprep.subr.bf16.mxu0 0
    %65 = vmatpush1.bf16.msra.mxu0 0
    %66 = vmatprep.subr.bf16.mxu0 0
    %67 = vmatpush1.bf16.msra.mxu0 0
    %68 = vmatprep.subr.bf16.mxu0 0
    %69 = vmatpush1.bf16.msra.mxu0 0
    %70 = vmatprep.subr.bf16.mxu0 0
    %71 = vmatpush1.bf16.msra.mxu0 0
    %72 = vmatprep.subr.bf16.mxu0 0
    %73 = vmatpush1.bf16.msra.mxu0 0
    %74 = vmatprep.subr.bf16.mxu0 0
    %75 = vmatpush1.bf16.msra.mxu0 0
    %76 = vmatprep.subr.bf16.mxu0 0
    %77 = vmatpush1.bf16.msra.mxu0 0
    %78 = vmatprep.subr.bf16.mxu0 0
    %79 = vmatpush1.bf16.msra.mxu0 0
    %80 = vmatprep.subr.bf16.mxu0 0
    %81 = vmatpush1.bf16.msra.mxu0 0
    %82 = vmatprep.subr.bf16.mxu0 0
    %83 = vmatpush1.bf16.msra.mxu0 0
    %84 = vmatprep.mubr.bf16.mxu0 0
    %85 = vmatmul.mubr.bf16.gmra.mrb[0].mxu0 %v50
    %v86 = vpop.f32.mrb[0].mxu0
    %v87 = vadd.f32 %v34, %v86
    %v88 = vpop.f32.mrb[0].mxu0
    %v89 = vpop.f32.mrb[0].mxu0
    %v90 = vadd.f32 %v34, %v89
    %v91 = vpop.f32.mrb[0].mxu0
    %92 = vdwg.mxu0
    %v93 = vpack.c.bf16 %v90, %v87
    %v94 = vtanh.bf16.pop %v93
    %v95 = vld [vmem:[%s4] sm:$0xf]
    %v96 = vld [vmem:[%s4 + $0x4] sm:$0xf]
    %v97 = vld [vmem:[%s4 + $0x8] sm:$0xf]
    %v98 = vld [vmem:[%s4 + $0xc] sm:$0xf]
    %v99 = vld [vmem:[%s4 + $0x10] sm:$0xf]
    %v100 = vld [vmem:[%s4 + $0x14] sm:$0xf]
    %v101 = vld [vmem:[%s4 + $0x18] sm:$0xf]
    %v102 = vld [vmem:[%s4 + $0x1c] sm:$0xf]
    %v103 = vld [vmem:[%s4 + $0x20] sm:$0xf]
    %v104 = vld [vmem:[%s4 + $0x24] sm:$0xf]
    %v105 = vld [vmem:[%s4 + $0x28] sm:$0xf]
    %v106 = vld [vmem:[%s4 + $0x2c] sm:$0xf]
    %v107 = vld [vmem:[%s4 + $0x30] sm:$0xf]
    %v108 = vld [vmem:[%s4 + $0x34] sm:$0xf]
    %v109 = vld [vmem:[%s4 + $0x38] sm:$0xf]
    %v110 = vld [vmem:[%s4 + $0x3c] sm:$0xf]
    %v127 = vunpack.c.l.b16 %v95
    %v128 = vunpack.c.l.b16 %v96
    %v129 = vunpack.c.l.b16 %v97
    %v130 = vunpack.c.l.b16 %v98
    %v131 = vunpack.c.l.b16 %v99
    %v132 = vunpack.c.l.b16 %v100
    %v133 = vunpack.c.l.b16 %v101
    %v134 = vunpack.c.l.b16 %v102
    %v135 = vunpack.c.l.b16 %v103
    %v136 = vunpack.c.l.b16 %v104
    %v137 = vunpack.c.l.b16 %v105
    %v138 = vunpack.c.l.b16 %v106
    %v139 = vunpack.c.l.b16 %v107
    %v140 = vunpack.c.l.b16 %v108
    %v141 = vunpack.c.l.b16 %v109
    %v142 = vunpack.c.l.b16 %v110
    %v143 = vpack.c.b16 %v128, %v127
    %v144 = vpack.c.b16 %v130, %v129
    %v145 = vpack.c.b16 %v132, %v131
    %v146 = vpack.c.b16 %v134, %v133
    %v147 = vpack.c.b16 %v136, %v135
    %v148 = vpack.c.b16 %v138, %v137
    %v149 = vpack.c.b16 %v140, %v139
    %v150 = vpack.c.b16 %v142, %v141
    %159 = vmatprep.subr.bf16.mxu0 0
    %160 = vmatpush1.bf16.msra.mxu0 %v143
    %161 = vmatprep.subr.bf16.mxu0 0
    %162 = vmatpush1.bf16.msra.mxu0 %v144
    %163 = vmatprep.subr.bf16.mxu0 0
    %164 = vmatpush1.bf16.msra.mxu0 %v145
    %165 = vmatprep.subr.bf16.mxu0 0
    %166 = vmatpush1.bf16.msra.mxu0 %v146
    %167 = vmatprep.subr.bf16.mxu0 0
    %168 = vmatpush1.bf16.msra.mxu0 %v147
    %169 = vmatprep.subr.bf16.mxu0 0
    %170 = vmatpush1.bf16.msra.mxu0 %v148
    %171 = vmatprep.subr.bf16.mxu0 0
    %172 = vmatpush1.bf16.msra.mxu0 %v149
    %173 = vmatprep.subr.bf16.mxu0 0
    %174 = vmatpush1.bf16.msra.mxu0 %v150
    %175 = vmatprep.subr.bf16.mxu0 0
    %176 = vmatpush1.bf16.msra.mxu0 0
    %177 = vmatprep.subr.bf16.mxu0 0
    %178 = vmatpush1.bf16.msra.mxu0 0
    %179 = vmatprep.subr.bf16.mxu0 0
    %180 = vmatpush1.bf16.msra.mxu0 0
    %181 = vmatprep.subr.bf16.mxu0 0
    %182 = vmatpush1.bf16.msra.mxu0 0
    %183 = vmatprep.subr.bf16.mxu0 0
    %184 = vmatpush1.bf16.msra.mxu0 0
    %185 = vmatprep.subr.bf16.mxu0 0
    %186 = vmatpush1.bf16.msra.mxu0 0
    %187 = vmatprep.subr.bf16.mxu0 0
    %188 = vmatpush1.bf16.msra.mxu0 0
    %189 = vmatprep.subr.bf16.mxu0 0
    %190 = vmatpush1.bf16.msra.mxu0 0
    %191 = vmatprep.mubr.bf16.mxu0 0
    %192 = vmatmul.mubr.bf16.gmra.mrb[0].mxu0 %v94
    %v193 = vpop.f32.mrb[0].mxu0
    %v194 = vadd.f32 0.0, %v193
    %v195 = vpop.f32.mrb[0].mxu0
    %v196 = vpop.f32.mrb[0].mxu0
    %v197 = vadd.f32 0.0, %v196
    %v198 = vpop.f32.mrb[0].mxu0
    %199 = vdwg.mxu0
    %200 = vxpose.xlu0.b32.start [1/16] %v194, 128
    %201 = vxpose.xlu0.b32.cont [2/16] 0.0, 128
    %202 = vxpose.xlu0.b32.cont [3/16] 0.0, 128
    %203 = vxpose.xlu0.b32.cont [4/16] 0.0, 128
    %204 = vxpose.xlu0.b32.cont [5/16] 0.0, 128
    %205 = vxpose.xlu0.b32.cont [6/16] 0.0, 128
    %206 = vxpose.xlu0.b32.cont [7/16] 0.0, 128
    %207 = vxpose.xlu0.b32.cont [8/16] 0.0, 128
    %208 = vxpose.xlu0.b32.cont [9/16] 0.0, 128
    %209 = vxpose.xlu0.b32.cont [10/16] 0.0, 128
    %210 = vxpose.xlu0.b32.cont [11/16] 0.0, 128
    %211 = vxpose.xlu0.b32.cont [12/16] 0.0, 128
    %212 = vxpose.xlu0.b32.cont [13/16] 0.0, 128
    %213 = vxpose.xlu0.b32.cont [14/16] 0.0, 128
    %214 = vxpose.xlu0.b32.cont [15/16] 0.0, 128
    %215 = vxpose.xlu0.b32.end [16/16] 0.0, 128
    %v216 = vpop.trf.xlu0
    %v217 = vpop.trf.xlu0
    %v218 = vpop.trf.xlu0
    %v219 = vpop.trf.xlu0
    %v220 = vpop.trf.xlu0
    %v221 = vpop.trf.xlu0
    %v222 = vpop.trf.xlu0
    %v223 = vpop.trf.xlu0
    %v224 = vpop.trf.xlu0
    %v225 = vpop.trf.xlu0
    %v226 = vpop.trf.xlu0
    %v227 = vpop.trf.xlu0
    %v228 = vpop.trf.xlu0
    %v229 = vpop.trf.xlu0
    %v230 = vpop.trf.xlu0
    %v231 = vpop.trf.xlu0
    %232 = vxpose.xlu0.b32.start [1/16] %v197, 128
    %233 = vxpose.xlu0.b32.cont [2/16] 0.0, 128
    %234 = vxpose.xlu0.b32.cont [3/16] 0.0, 128
    %235 = vxpose.xlu0.b32.cont [4/16] 0.0, 128
    %236 = vxpose.xlu0.b32.cont [5/16] 0.0, 128
    %237 = vxpose.xlu0.b32.cont [6/16] 0.0, 128
    %238 = vxpose.xlu0.b32.cont [7/16] 0.0, 128
    %239 = vxpose.xlu0.b32.cont [8/16] 0.0, 128
    %240 = vxpose.xlu0.b32.cont [9/16] 0.0, 128
    %241 = vxpose.xlu0.b32.cont [10/16] 0.0, 128
    %242 = vxpose.xlu0.b32.cont [11/16] 0.0, 128
    %243 = vxpose.xlu0.b32.cont [12/16] 0.0, 128
    %244 = vxpose.xlu0.b32.cont [13/16] 0.0, 128
    %245 = vxpose.xlu0.b32.cont [14/16] 0.0, 128
    %246 = vxpose.xlu0.b32.cont [15/16] 0.0, 128
    %247 = vxpose.xlu0.b32.end [16/16] 0.0, 128
    %v248 = vpop.trf.xlu0
    %v249 = vpop.trf.xlu0
    %v250 = vpop.trf.xlu0
    %v251 = vpop.trf.xlu0
    %v252 = vpop.trf.xlu0
    %v253 = vpop.trf.xlu0
    %v254 = vpop.trf.xlu0
    %v255 = vpop.trf.xlu0
    %v256 = vpop.trf.xlu0
    %v257 = vpop.trf.xlu0
    %v258 = vpop.trf.xlu0
    %v259 = vpop.trf.xlu0
    %v260 = vpop.trf.xlu0
    %v261 = vpop.trf.xlu0
    %v262 = vpop.trf.xlu0
    %v263 = vpop.trf.xlu0
    %v264 = vtanh.pop %v216
    %v265 = vtanh.pop %v248
    %v266 = vmul.f32 %v264, %v264
    %v267 = vmul.f32 %v265, %v265
    %vm268 = vcmask 60416
    %v269 = vsel %vm268, %v266, 0.0
    %v270 = vrot.slane %v269, 4
    %v271 = vadd.f32 %v269, %v270
    %v272 = vrot.slane %v271, 2
    %v273 = vadd.f32 %v271, %v272
    %v274 = vrot.slane %v273, 1
    %v275 = vadd.f32 %v273, %v274
    %v276 = vsel %vm268, %v267, 0.0
    %v277 = vrot.slane %v276, 4
    %v278 = vadd.f32 %v276, %v277
    %v279 = vrot.slane %v278, 2
    %v280 = vadd.f32 %v278, %v279
    %v281 = vrot.slane %v280, 1
    %v282 = vadd.f32 %v280, %v281
    %v283 = vrsqrt.pop %v275
    %v284 = vrsqrt.pop %v282
    %v285 = vmul.f32 %v264, %v283
    %v286 = vmul.f32 %v265, %v284
    %v287 = vld [vmem:[%s1] sm:$0x1]
    %v288 = vld [vmem:[%s1 + $0x1] sm:$0x1]
    %v291 = vlaneseq
    %v292 = vshrl.u32 %v291, 7
    %v293 = vsub.s32 0, %v292
    %v294 = vrot.slane %v287, %v293
    %v295 = vlaneseq
    %v296 = vshrl.u32 %v295, 7
    %v297 = vsub.s32 0, %v296
    %v298 = vrot.slane %v288, %v297
    %v301 = vmul.f32 %v285, %v294
    %v302 = vmul.f32 %v286, %v298
    %v303 = vmul.f32 %v301, 1.442695
    %v304 = vpow.pop %v303
    %v305 = vmul.f32 %v302, 1.442695
    %v306 = vpow.pop %v305
    %v307 = vsel %vm268, %v304, 0.0
    %308 = vadd.xlane.f32.xlu0 %v307
    %v309 = vpop.xlane.xlu0 %308
    %v310 = vsel %vm268, %v306, 0.0
    %311 = vadd.xlane.f32.xlu0 %v310
    %v312 = vpop.xlane.xlu0 %311
    %v313 = vrcp.pop %v309
    %v314 = vrcp.pop %v312
    %v315 = vmul.f32 %v304, %v313
    %v316 = vmul.f32 %v306, %v314
    %v317 = vmul.f32 %v315, %v294
    %v318 = vmul.f32 %v316, %v298
    %v319 = vsel %vm268, %v317, 0.0
    %320 = vadd.xlane.f32.xlu0 %v319
    %v321 = vpop.xlane.xlu0 %320
    %v322 = vsel %vm268, %v318, 0.0
    %323 = vadd.xlane.f32.xlu0 %v322
    %v324 = vpop.xlane.xlu0 %323
    %v325 = vadd.f32 %v321, 1e-13
    %v326 = vadd.f32 %v324, 1e-13
    %v327 = vrcp.pop %v325
    %v328 = vmul.f32 %v317, %v327
    %v329 = vrcp.pop %v326
    %v330 = vmul.f32 %v318, %v329
    %331 = vst.msk [vmem:[#allocation2] sm:$0xf] %vm268, %v328
    %332 = vst.msk [vmem:[#allocation2 + $0x4] sm:$0xf] %vm268, %v330
    // Predicated region
    $region22: #{tpu_custom_call.1} parent=1 // pred_check
      _
    $region23: #{tpu_custom_call.1} parent=1 // pred_check_branch
      %334 = sbr.rel (0) target = $region25
    $region24: #{tpu_custom_call.1} parent=1 // pred_region
      %s336 = ssub.s32 128, 128
      %337 = vsyncadd [#allocation3], %s336
      %s338 = sshll.u32 [#allocation2], 4
      %s339 = int_to_ptr.vmem [resolvable:$true] %s338
      %344 = dma.vmem_to_hbm [thread:$0]  %s339, 128, %s5, [#allocation3], 64, 64, 4
    $region25: #{tpu_custom_call.1} parent=1 // pred_fallthru
      _
    // Predicated region
    $region26: #{tpu_custom_call.1} parent=1 // pred_check
      _
    $region27: #{tpu_custom_call.1} parent=1 // pred_check_branch
      %346 = sbr.rel (0) target = $region29
    $region28: #{tpu_custom_call.1} parent=1 // pred_region
      %347 = dma.done [#allocation3], 128
    $region29: #{tpu_custom_call.1} parent=1 // pred_fallthru
      _
    %348 = vsyncpa [#allocation3], 1

</llo_original>
